<compile_context>
chip_gen: v7x
topology: tpu7x:2x2x1
jax: 0.10.0
libtpu: 0.0.40
codegen_flags: <defaults>
</compile_context>

<pallas_src>
import jax
import jax.numpy as jnp
from jax.experimental import pallas as pl
from jax.experimental.pallas import tpu as pltpu


def _round_up(v, m):
    return (v + m - 1) // m * m


def _cdiv(a, b):
    return -(-a // b)


def _vmem_capacity_bytes():
    """Physical VMEM of the local chip; conservative (v7x-sized) fallback if unknown."""
    try:
        return int(pltpu.get_tpu_info().vmem_capacity_bytes)
    except Exception:
        return 64 << 20


def _choose_tiles(N, compute_dtype, big_vmem):
    """Square (TM == TN) adjacency tile and padded node count n_p (n_p % tile == 0)."""
    n128 = _round_up(max(N, 1), 128)
    isz = jnp.dtype(compute_dtype).itemsize
    # v5e/v6e (128 MiB VMEM): 2048^2 tiles even in f32.
    # v7x (64 MiB VMEM):      2048^2 only for <=16-bit adjacency, 1024^2 for f32.
    t_max = 2048 if (big_vmem or isz <= 2) else 1024
    # v7x has 2 TensorCores: keep >= 2 row tiles so the 'parallel' row axis can be
    # megacore-sharded (only applied on small-VMEM chips; no-op on single-TC v5e/v6e).
    min_tiles = 2 if (not big_vmem and n128 >= 256) else 1
    n_tiles = max(_cdiv(n128, t_max), min_tiles)
    tile = _round_up(_cdiv(n128, n_tiles), 128)
    return tile, n_tiles * tile


def rgcn_kernel(adj_ref, xc_ref, xr_ref, basis_ref, root_ref, bias_ref, o_ref, agg_ref):
    """Grid = (row_tile i, col_tile c, basis b) -- b innermost.

    * o_ref block index depends only on i  -> resident across (c, b), accumulated in place.
    * xc_ref block index depends only on c -> resident across the inner b axis
      (x column stream read once per (i, c)).
    * agg_ref[b] accumulates sum_c A_b[i,c] @ x[c] in f32; the basis projection and the
      output read-modify-write run only once per (i, b), at the last column tile.
    """
    c = pl.program_id(1)
    b = pl.program_id(2)
    last_c = pl.num_programs(1) - 1

    # root / self term + bias, once per row tile
    @pl.when(jnp.logical_and(c == 0, b == 0))
    def _():
        o_ref[...] = (
            jnp.dot(xr_ref[...].astype(jnp.float32), root_ref[...],
                    preferred_element_type=jnp.float32)
            + bias_ref[...]
        )

    # mean-aggregated neighbours for basis b over this column tile (relations already
    # folded into the basis-space adjacency A_b on the host side): (TM,TN)@(TN,Fin) -> f32
    partial = jnp.dot(adj_ref[...], xc_ref[...], preferred_element_type=jnp.float32)

    @pl.when(c == 0)
    def _():
        agg_ref[b] = partial

    @pl.when(c > 0)
    def _():
        agg_ref[b] = agg_ref[b] + partial

    # basis projection hoisted out of the column loop: once per (row tile, basis),
    # in f32 (basis is resident f32, so no lossy downcast on the bf16 path).
    @pl.when(c == last_c)
    def _():
        o_ref[...] += jnp.dot(agg_ref[b], basis_ref[...],
                              preferred_element_type=jnp.float32)


def rgcn_pallas(x, adj_b, basis, w_root, bias, *, compute_dtype=jnp.bfloat16, tile=None):
    """node_out = x @ W_root + bias + sum_b A_b @ x @ basis_b   (f32 accumulation, f32 out)."""
    N, Fin = x.shape
    B = adj_b.shape[0]
    Fout = w_root.shape[1]
    assert B >= 1, "num_bases must be >= 1 (output would be uninitialized otherwise)"

    # lane-dense feature padding (multiples of the 128-lane vreg width)
    # TODO(synk): on v6e/v7x with Fin/Fout > 128, pad feature dims to 256 multiples to fill
    # the 2x256^2 MXU once the adjacency HBM stream is no longer the bottleneck.
    fin_p = _round_up(Fin, 128)
    fout_p = _round_up(Fout, 128)

    vmem_cap = _vmem_capacity_bytes()
    big_vmem = vmem_cap >= (96 << 20)   # v5e/v6e: 128 MiB physical ; v7x: 64 MiB

    if tile is None:
        tile, n_p = _choose_tiles(N, compute_dtype, big_vmem)
    else:
        tile = _round_up(tile, 128)
        n_p = _round_up(max(N, 1), tile)

    cd = compute_dtype
    # big streams (adjacency, x) in compute_dtype (bf16 by default -> halves HBM traffic);
    # small resident weights stay f32 so projection / root matmuls lose no precision.
    x_p = jnp.zeros((n_p, fin_p), cd).at[:N, :Fin].set(x.astype(cd))
    adj_p = jnp.zeros((B, n_p, n_p), cd).at[:, :N, :N].set(adj_b.astype(cd))
    basis_p = jnp.zeros((B, fin_p, fout_p), jnp.float32).at[:, :Fin, :Fout].set(
        basis.astype(jnp.float32))
    root_p = jnp.zeros((fin_p, fout_p), jnp.float32).at[:Fin, :Fout].set(
        w_root.astype(jnp.float32))
    bias_p = jnp.zeros((1, fout_p), jnp.float32).at[0, :Fout].set(bias.astype(jnp.float32))

    n_tiles = n_p // tile
    grid = (n_tiles, n_tiles, B)

    isz = jnp.dtype(cd).itemsize
    est = (
        2 * tile * tile * isz            # adjacency tile, double-buffered (dominant stream)
        + 4 * tile * fin_p * isz         # x row + column tiles, double-buffered
        + 4 * fin_p * fout_p * 4         # basis + root (f32), double-buffered
        + 2 * fout_p * 4                 # bias
        + B * tile * fin_p * 4           # f32 aggregation scratch
        + 2 * tile * fout_p * 4          # f32 output tile
        + (4 << 20)                      # headroom
    )
    # v5e/v6e: allow ~100 MiB scoped VMEM; v7x: physical VMEM is only 64 MiB, cap at ~48 MiB
    # so double-buffering isn't evicted.
    cap = (100 << 20) if big_vmem else (48 << 20)
    vmem_limit = int(min(cap, max(32 << 20, est)))

    out_p = pl.pallas_call(
        rgcn_kernel,
        out_shape=jax.ShapeDtypeStruct((n_p, fout_p), jnp.float32),
        grid_spec=pltpu.PrefetchScalarGridSpec(
            num_scalar_prefetch=0,
            grid=grid,
            in_specs=[
                # A_b row/col tile (leading basis dim squeezed) -- streamed exactly once.
                # NOTE: pipeline_mode=pl.Buffered(3) is an optional follow-up if profiling
                # shows exposed DMA at step boundaries after the bf16 shrink.
                pl.BlockSpec((pl.Squeezed(), tile, tile), lambda i, c, b: (b, i, c)),
                # x, column tile (K side of the aggregation) -- resident across inner b axis
                pl.BlockSpec((tile, fin_p), lambda i, c, b: (c, 0)),
                # x, row tile (root/self term) -- resident across (c, b)
                pl.BlockSpec((tile, fin_p), lambda i, c, b: (i, 0)),
                # basis[b] (small, re-fetched per step -- cheap)
                pl.BlockSpec((pl.Squeezed(), fin_p, fout_p), lambda i, c, b: (b, 0, 0)),
                # W_root (resident)
                pl.BlockSpec((fin_p, fout_p), lambda i, c, b: (0, 0)),
                # bias (resident)
                pl.BlockSpec((1, fout_p), lambda i, c, b: (0, 0)),
            ],
            out_specs=pl.BlockSpec((tile, fout_p), lambda i, c, b: (i, 0)),
            scratch_shapes=[pltpu.VMEM((B, tile, fin_p), jnp.float32)],
        ),
        compiler_params=pltpu.CompilerParams(
            dimension_semantics=("parallel", "arbitrary", "arbitrary"),
            vmem_limit_bytes=vmem_limit,
        ),
    )(adj_p, x_p, x_p, basis_p, root_p, bias_p)

    return out_p[:N, :Fout]


def custom_graph_convolution_layer(x, edge_index, edge_type, edge_attr, params,
                                   *, compute_dtype=jnp.bfloat16):
    """Forward pass. Returns (node_out, edge_embeddings); edge_update is identity."""
    basis, comp, w_root, bias = (
        params["basis"], params["comp"], params["root"], params["bias"]
    )
    N = x.shape[0]
    R, B = comp.shape

    # --- glue (XLA): densify edge list -> per-relation, row-normalized ('mean') adjacency,
    #     then fold relations into bases:  A_b = sum_r comp[r, b] * adj_norm[r]   (B << R).
    # TODO(synk): at production graph sizes, skip the dense (R,N,N) scatter and add
    # block-sparse tile skipping: per-(b,i,c) tile-nonzero counts via scalar prefetch +
    # data-dependent index_map re-pointing empty adjacency tiles, pl.when-gating the matmul.
    src, dst = edge_index[0], edge_index[1]
    adj = jnp.zeros((R, N, N), jnp.float32).at[edge_type, dst, src].add(1.0)
    deg = adj.sum(axis=-1, keepdims=True)
    adj_norm = adj / jnp.maximum(deg, 1.0)
    adj_b = jnp.einsum("rb,rij->bij", comp, adj_norm)  # (B, N, N)

    # --- hot path: Pallas kernel (aggregation matmuls + hoisted basis projection) ---
    node_out = rgcn_pallas(x, adj_b, basis, w_root, bias, compute_dtype=compute_dtype)
    edge_embeddings = edge_attr  # identity edge_update
    return node_out, edge_embeddings


def reference_rgcn(x, edge_index, edge_type, params):
    """Pure-JAX reference of PyG RGCNConv(aggr='mean') for correctness check."""
    basis, comp, w_root, bias = (
        params["basis"], params["comp"], params["root"], params["bias"]
    )
    N = x.shape[0]
    R = comp.shape[0]
    w_rel = jnp.einsum("rb,bio->rio", comp, basis)
    out = x @ w_root + bias
    src, dst = edge_index[0], edge_index[1]
    for r in range(R):
        mask = (edge_type == r).astype(jnp.float32)
        summed = jnp.zeros((N, x.shape[1])).at[dst].add(x[src] * mask[:, None])
        cnt = jnp.zeros((N,)).at[dst].add(mask)
        mean = summed / jnp.maximum(cnt, 1.0)[:, None]
        out = out + mean @ w_rel[r]
    return out


if __name__ == "__main__":
    # small shapes consistent with the module
    N = 16            # number of nodes
    IN_FEATURES = 8
    OUT_FEATURES = 16
    NUM_RELATIONS = 3
    NUM_BASES = 2
    E = 32            # number of edges
    EDGE_DIM = 4

    key = jax.random.PRNGKey(0)
    kx, ke, kt, ka, kb, kc, kr, kbias = jax.random.split(key, 8)

    x = jax.random.normal(kx, (N, IN_FEATURES), jnp.float32)
    edge_index = jax.random.randint(ke, (2, E), 0, N, dtype=jnp.int32)
    edge_type = jax.random.randint(kt, (E,), 0, NUM_RELATIONS, dtype=jnp.int32)
    edge_attr = jax.random.normal(ka, (E, EDGE_DIM), jnp.float32)

    # parameter shapes from RGCNConv with num_bases decomposition
    params = {
        "basis": jax.random.normal(kb, (NUM_BASES, IN_FEATURES, OUT_FEATURES), jnp.float32)
                 * (1.0 / jnp.sqrt(IN_FEATURES)),
        "comp":  jax.random.normal(kc, (NUM_RELATIONS, NUM_BASES), jnp.float32),
        "root":  jax.random.normal(kr, (IN_FEATURES, OUT_FEATURES), jnp.float32)
                 * (1.0 / jnp.sqrt(IN_FEATURES)),
        "bias":  jax.random.normal(kbias, (OUT_FEATURES,), jnp.float32) * 0.01,
    }

    ref = reference_rgcn(x, edge_index, edge_type, params)

    # default (bf16 streams, f32 accumulation) path
    node_out, edge_emb = custom_graph_convolution_layer(
        x, edge_index, edge_type, edge_attr, params
    )
    node_out = jax.block_until_ready(node_out)
    edge_emb = jax.block_until_ready(edge_emb)
    assert node_out.shape == (N, OUT_FEATURES)
    assert edge_emb.shape == (E, EDGE_DIM)
    assert jnp.array_equal(edge_emb, edge_attr)
    assert jnp.allclose(node_out, ref, atol=2e-1, rtol=1e-1)  # bf16 streams: loose tolerance

    # f32 path: exact-tolerance correctness check
    node_out_f32, _ = custom_graph_convolution_layer(
        x, edge_index, edge_type, edge_attr, params, compute_dtype=jnp.float32
    )
    node_out_f32 = jax.block_until_ready(node_out_f32)
    assert jnp.allclose(node_out_f32, ref, atol=1e-4, rtol=1e-4)

    print("KERNEL_OK")
</pallas_src>

<mosaic_0001>
module attributes {stable_mosaic.version = 11 : i64} {
  func.func @rgcn_kernel(%arg0: i32, %arg1: i32, %arg2: i32, %arg3: memref<1x128x128xbf16, #tpu.memory_space<vmem>>, %arg4: memref<128x128xbf16, #tpu.memory_space<vmem>>, %arg5: memref<128x128xbf16, #tpu.memory_space<vmem>>, %arg6: memref<1x128x128xf32, #tpu.memory_space<vmem>>, %arg7: memref<128x128xf32, #tpu.memory_space<vmem>>, %arg8: memref<1x128xf32, #tpu.memory_space<vmem>>, %arg9: memref<128x128xf32, #tpu.memory_space<vmem>>, %arg10: memref<2x128x128xf32, #tpu.memory_space<vmem>>) attributes {dimension_semantics = [#tpu.dimension_semantics<parallel>, #tpu.dimension_semantics<arbitrary>, #tpu.dimension_semantics<arbitrary>], iteration_bounds = array<i64: 1, 1, 2>, scalar_prefetch = 0 : i64, scratch_operands = 1 : i64, tpu.core_type = #tpu.core_type<tc>, window_params = [{transform_indices = @transform_0, window_bounds = array<i64: 1, 128, 128>}, {transform_indices = @transform_1, window_bounds = array<i64: 128, 128>}, {transform_indices = @transform_2, window_bounds = array<i64: 128, 128>}, {transform_indices = @transform_3, window_bounds = array<i64: 1, 128, 128>}, {pipeline_mode = #tpu.pipeline_mode<synchronous>, transform_indices = @transform_4, window_bounds = array<i64: 128, 128>}, {pipeline_mode = #tpu.pipeline_mode<synchronous>, transform_indices = @transform_5, window_bounds = array<i64: 1, 128>}, {transform_indices = @transform_6, window_bounds = array<i64: 128, 128>}]} {
    %c0_i32 = arith.constant 0 : i32
    %0 = arith.cmpi eq, %arg1, %c0_i32 : i32
    %c0_i32_0 = arith.constant 0 : i32
    %1 = arith.cmpi eq, %arg2, %c0_i32_0 : i32
    %2 = arith.andi %0, %1 : i1
    %3 = arith.extui %2 : i1 to i32
    %c0_i32_1 = arith.constant 0 : i32
    %4 = arith.cmpi ne, %3, %c0_i32_1 : i32
    scf.if %4 {
      %c0_12 = arith.constant 0 : index
      %c0_13 = arith.constant 0 : index
      %18 = vector.load %arg5[%c0_12, %c0_13] : memref<128x128xbf16, #tpu.memory_space<vmem>>, vector<128x128xbf16>
      %19 = arith.extf %18 : vector<128x128xbf16> to vector<128x128xf32>
      %c0_14 = arith.constant 0 : index
      %c0_15 = arith.constant 0 : index
      %20 = vector.load %arg7[%c0_14, %c0_15] : memref<128x128xf32, #tpu.memory_space<vmem>>, vector<128x128xf32>
      %cst_16 = arith.constant dense<0.000000e+00> : vector<128x128xf32>
      %21 = tpu.matmul %19, %20, %cst_16 {dimension_numbers = #tpu.dot_dimension_numbers<[1], [0], [0], [1], [0, 0, 1, 1], [], []>} : vector<128x128xf32>, vector<128x128xf32>, vector<128x128xf32> -> vector<128x128xf32>
      %c0_17 = arith.constant 0 : index
      %c0_18 = arith.constant 0 : index
      %22 = vector.load %arg8[%c0_17, %c0_18] : memref<1x128xf32, #tpu.memory_space<vmem>>, vector<1x128xf32>
      %23 = vector.broadcast %22 : vector<1x128xf32> to vector<128x128xf32>
      %24 = arith.addf %21, %23 : vector<128x128xf32>
      %c0_19 = arith.constant 0 : index
      %c0_20 = arith.constant 0 : index
      %25 = vector.load %arg9[%c0_19, %c0_20] : memref<128x128xf32, #tpu.memory_space<vmem>>, vector<128x128xf32>
      tpu.vector_store %arg9[%c0_19, %c0_20], %24 {strides = array<i32>} : memref<128x128xf32, #tpu.memory_space<vmem>>, vector<128x128xf32>,
    } else {
    }
    %c0 = arith.constant 0 : index
    %c0_2 = arith.constant 0 : index
    %c0_3 = arith.constant 0 : index
    %5 = vector.load %arg3[%c0, %c0_2, %c0_3] : memref<1x128x128xbf16, #tpu.memory_space<vmem>>, vector<1x128x128xbf16>
    %6 = vector.shape_cast %5 : vector<1x128x128xbf16> to vector<128x128xbf16>
    %c0_4 = arith.constant 0 : index
    %c0_5 = arith.constant 0 : index
    %7 = vector.load %arg4[%c0_4, %c0_5] : memref<128x128xbf16, #tpu.memory_space<vmem>>, vector<128x128xbf16>
    %cst = arith.constant dense<0.000000e+00> : vector<128x128xf32>
    %8 = tpu.matmul %6, %7, %cst {dimension_numbers = #tpu.dot_dimension_numbers<[1], [0], [0], [1], [0, 0, 1, 1], [], []>} : vector<128x128xbf16>, vector<128x128xbf16>, vector<128x128xf32> -> vector<128x128xf32>
    %c0_i32_6 = arith.constant 0 : i32
    %9 = arith.cmpi eq, %arg1, %c0_i32_6 : i32
    %10 = arith.extui %9 : i1 to i32
    %c0_i32_7 = arith.constant 0 : i32
    %11 = arith.cmpi ne, %10, %c0_i32_7 : i32
    scf.if %11 {
      %18 = arith.index_cast %arg2 : i32 to index
      %c0_12 = arith.constant 0 : index
      %c0_13 = arith.constant 0 : index
      %19 = vector.load %arg10[%18, %c0_12, %c0_13] : memref<2x128x128xf32, #tpu.memory_space<vmem>>, vector<1x128x128xf32>
      %20 = vector.shape_cast %19 : vector<1x128x128xf32> to vector<128x128xf32>
      %21 = vector.shape_cast %8 : vector<128x128xf32> to vector<1x128x128xf32>
      tpu.vector_store %arg10[%18, %c0_12, %c0_13], %21 {strides = array<i32>} : memref<2x128x128xf32, #tpu.memory_space<vmem>>, vector<1x128x128xf32>,
    } else {
    }
    %c0_i32_8 = arith.constant 0 : i32
    %12 = arith.cmpi sgt, %arg1, %c0_i32_8 : i32
    %13 = arith.extui %12 : i1 to i32
    %c0_i32_9 = arith.constant 0 : i32
    %14 = arith.cmpi ne, %13, %c0_i32_9 : i32
    scf.if %14 {
      %18 = arith.index_cast %arg2 : i32 to index
      %c0_12 = arith.constant 0 : index
      %c0_13 = arith.constant 0 : index
      %19 = vector.load %arg10[%18, %c0_12, %c0_13] : memref<2x128x128xf32, #tpu.memory_space<vmem>>, vector<1x128x128xf32>
      %20 = vector.shape_cast %19 : vector<1x128x128xf32> to vector<128x128xf32>
      %21 = arith.addf %20, %8 : vector<128x128xf32>
      %22 = arith.index_cast %arg2 : i32 to index
      %c0_14 = arith.constant 0 : index
      %c0_15 = arith.constant 0 : index
      %23 = vector.load %arg10[%22, %c0_14, %c0_15] : memref<2x128x128xf32, #tpu.memory_space<vmem>>, vector<1x128x128xf32>
      %24 = vector.shape_cast %23 : vector<1x128x128xf32> to vector<128x128xf32>
      %25 = vector.shape_cast %21 : vector<128x128xf32> to vector<1x128x128xf32>
      tpu.vector_store %arg10[%22, %c0_14, %c0_15], %25 {strides = array<i32>} : memref<2x128x128xf32, #tpu.memory_space<vmem>>, vector<1x128x128xf32>,
    } else {
    }
    %c0_i32_10 = arith.constant 0 : i32
    %15 = arith.cmpi eq, %arg1, %c0_i32_10 : i32
    %16 = arith.extui %15 : i1 to i32
    %c0_i32_11 = arith.constant 0 : i32
    %17 = arith.cmpi ne, %16, %c0_i32_11 : i32
    scf.if %17 {
      %c0_12 = arith.constant 0 : index
      %c0_13 = arith.constant 0 : index
      %18 = vector.load %arg9[%c0_12, %c0_13] : memref<128x128xf32, #tpu.memory_space<vmem>>, vector<128x128xf32>
      %19 = arith.index_cast %arg2 : i32 to index
      %c0_14 = arith.constant 0 : index
      %c0_15 = arith.constant 0 : index
      %20 = vector.load %arg10[%19, %c0_14, %c0_15] : memref<2x128x128xf32, #tpu.memory_space<vmem>>, vector<1x128x128xf32>
      %21 = vector.shape_cast %20 : vector<1x128x128xf32> to vector<128x128xf32>
      %c0_16 = arith.constant 0 : index
      %c0_17 = arith.constant 0 : index
      %c0_18 = arith.constant 0 : index
      %22 = vector.load %arg6[%c0_16, %c0_17, %c0_18] : memref<1x128x128xf32, #tpu.memory_space<vmem>>, vector<1x128x128xf32>
      %23 = vector.shape_cast %22 : vector<1x128x128xf32> to vector<128x128xf32>
      %cst_19 = arith.constant dense<0.000000e+00> : vector<128x128xf32>
      %24 = tpu.matmul %21, %23, %cst_19 {dimension_numbers = #tpu.dot_dimension_numbers<[1], [0], [0], [1], [0, 0, 1, 1], [], []>} : vector<128x128xf32>, vector<128x128xf32>, vector<128x128xf32> -> vector<128x128xf32>
      %25 = arith.addf %18, %24 : vector<128x128xf32>
      %c0_20 = arith.constant 0 : index
      %c0_21 = arith.constant 0 : index
      %26 = vector.load %arg9[%c0_20, %c0_21] : memref<128x128xf32, #tpu.memory_space<vmem>>, vector<128x128xf32>
      tpu.vector_store %arg9[%c0_20, %c0_21], %25 {strides = array<i32>} : memref<128x128xf32, #tpu.memory_space<vmem>>, vector<128x128xf32>,
    } else {
    }
    return
  }
  func.func @transform_0(%arg0: i32, %arg1: i32, %arg2: i32) -> (i32, i32, i32) {
    %c0_i32 = arith.constant 0 : i32
    return %arg2, %arg0, %arg1 : i32, i32, i32
  }
  func.func @transform_1(%arg0: i32, %arg1: i32, %arg2: i32) -> (i32, i32) {
    %c0_i32 = arith.constant 0 : i32
    %c0_i32_0 = arith.constant 0 : i32
    return %arg1, %c0_i32 : i32, i32
  }
  func.func @transform_2(%arg0: i32, %arg1: i32, %arg2: i32) -> (i32, i32) {
    %c0_i32 = arith.constant 0 : i32
    %c0_i32_0 = arith.constant 0 : i32
    return %arg0, %c0_i32 : i32, i32
  }
  func.func @transform_3(%arg0: i32, %arg1: i32, %arg2: i32) -> (i32, i32, i32) {
    %c0_i32 = arith.constant 0 : i32
    %c0_i32_0 = arith.constant 0 : i32
    %c0_i32_1 = arith.constant 0 : i32
    return %arg2, %c0_i32, %c0_i32_0 : i32, i32, i32
  }
  func.func @transform_4(%arg0: i32, %arg1: i32, %arg2: i32) -> (i32, i32) {
    %c0_i32 = arith.constant 0 : i32
    %c0_i32_0 = arith.constant 0 : i32
    %c0_i32_1 = arith.constant 0 : i32
    return %c0_i32, %c0_i32_0 : i32, i32
  }
  func.func @transform_5(%arg0: i32, %arg1: i32, %arg2: i32) -> (i32, i32) {
    %c0_i32 = arith.constant 0 : i32
    %c0_i32_0 = arith.constant 0 : i32
    %c0_i32_1 = arith.constant 0 : i32
    return %c0_i32, %c0_i32_0 : i32, i32
  }
  func.func @transform_6(%arg0: i32, %arg1: i32, %arg2: i32) -> (i32, i32) {
    %c0_i32 = arith.constant 0 : i32
    %c0_i32_0 = arith.constant 0 : i32
    return %arg0, %c0_i32 : i32, i32
  }
}

</mosaic_0001>

<llo_original>
// kernel: tpu_custom_call.1
$region0: #{tpu_custom_call.1}
  #allocation0 [shape = 'u32[]', space=smem, size = 0x4, offset = 0x4, fixed_abs, tag = 'smem constant byte address 0x4 - core index']
  #allocation1 [shape = 'u32[144,128]{1,0:T(1,128)}', space=vmem, size = 0x12000, scoped, tag = 'internal scratch']
  #allocation2 [shape = 'f32[2,128,128]{2,1,0:T(8,128)}', space=vmem, size = 0x20000, scoped, tag = 'scratch operand']
  %s0 = inlined_call_operand.hbm [shape: bf16[2,128,128], index: 0, kind: input, shape index: {}]
  %s1 = inlined_call_operand.hbm [shape: bf16[128,128], index: 1, kind: input, shape index: {}]
  %s2 = inlined_call_operand.hbm [shape: bf16[128,128], index: 2, kind: input, shape index: {}]
  %s3 = inlined_call_operand.hbm [shape: f32[2,128,128], index: 3, kind: input, shape index: {}]
  %s4 = inlined_call_operand.hbm [shape: f32[128,128], index: 4, kind: input, shape index: {}]
  %s5 = inlined_call_operand.vmem [shape: f32[1,128], index: 5, kind: input, shape index: {}]
  %s6 = inlined_call_operand.hbm [shape: f32[128,128], index: 6, kind: output, shape index: {}]
  %s7 = sld [smem:[#allocation0]]
  $region93: #{tpu_custom_call.1} parent=0
    _
  %s9 = ssub.s32 1, %s7
  %s10 = scalar_select 0, %s9, %s7
  $region1: #{tpu_custom_call.1} parent=0
    #allocation3 [shape = 'u8[65536]{0}', space=vmem, size = 0x10000, scoped, tag = 'input window, operand 0']
    #allocation4 [shape = 's32[2]{0}', space=sflag, size = 0x8, scoped, tag = 'scoped memory for tpu_custom_call.1']
    #allocation5 [shape = 's32[2]{0}', space=sflag, size = 0x8, scoped, tag = 'scoped memory for tpu_custom_call.1']
    #allocation6 [shape = 'u8[32768]{0}', space=vmem, size = 0x8000, scoped, tag = 'input window, operand 1, single buffered']
    #allocation7 [shape = 's32[1]{0}', space=sflag, size = 0x4, scoped, tag = 'scoped memory for tpu_custom_call.1']
    #allocation8 [shape = 'u8[32768]{0}', space=vmem, size = 0x8000, scoped, tag = 'input window, operand 2, single buffered']
    #allocation9 [shape = 'u8[131072]{0}', space=vmem, size = 0x20000, scoped, tag = 'input window, operand 3']
    #allocation10 [shape = 's32[2]{0}', space=sflag, size = 0x8, scoped, tag = 'scoped memory for tpu_custom_call.1']
    #allocation11 [shape = 'u8[65536]{0}', space=vmem, size = 0x10000, scoped, tag = 'input window, operand 4, single buffered']
    #allocation12 [shape = 'u8[65536]{0}', space=vmem, size = 0x10000, scoped, tag = 'output window, operand 0, single buffered']
    %11 = vsyncpa [#allocation4], 0
    %s12 = scalar_lea.sflag [#allocation4], 1
    %13 = vsyncpa %s12, 0
    %14 = vsyncpa [#allocation7], 0
    %15 = vsyncpa [#allocation10], 0
    %s16 = scalar_lea.sflag [#allocation10], 1
    %17 = vsyncpa %s16, 0
    %18 = vsyncpa [#allocation5], 0
    loop: start=0, step=1, limit=4
    $region2: #{tpu_custom_call.1} parent=1 // loop_pre_header
      _
    $region3: #{tpu_custom_call.1} parent=1 // loop_header
      %s20 = sphi 0, %s24
      %p21 = scmp.ge.s32.totalorder %s20, 4
      %s27 = sphi 0, %s46
      %s28 = sphi 0, %s42
      %s29 = sphi 0, %s38
      %s30 = sphi 0, %s27
      %s31 = sphi 0, %s28
      %s32 = sphi 0, %s29
      %s33 = sphi 0, %s30
      %s34 = sphi 0, %s31
      %s35 = sphi 0, %s32
      %s53 = sphi 0, %s55
      %s56 = sphi 0, %s53
      %s57 = sphi 0, %s56
      %s73 = sphi 0, %s57
      %s79 = sphi 0, %s81
      %s82 = sphi 0, %s79
      %s83 = sphi 0, %s82
      %s99 = sphi 0, %s83
      %s105 = sphi 0, %s107
      %s108 = sphi 0, %s105
      %s109 = sphi 0, %s108
      %s125 = sphi 0, %s109
      %s131 = sphi 0, %s133
      %s134 = sphi 0, %s131
      %s135 = sphi 0, %s134
      %s151 = sphi 0, %s135
      %s155 = sphi 0, %s155
      %s157 = sphi 0, %s155
      %s158 = sphi 0, %s157
      %s172 = sphi 0, %s158
      %s176 = sphi 0, %s176
      %s178 = sphi 0, %s176
      %s179 = sphi 0, %s178
      %s193 = sphi 0, %s179
      %s199 = sphi 0, %s201
      %s202 = sphi 0, %s199
      %s203 = sphi 0, %s202
      %s219 = sphi 0, %s203
    $region4: #{tpu_custom_call.1} parent=1 // loop_header_branch
      %23 = sbr.rel (%p21) target = $region8
    $region5: #{tpu_custom_call.1} parent=1 // loop_body
      %s25 = ssub.s32 %s20, 1
      %s26 = ssub.s32 %s20, 2
      %s36 = sadd.s32 1, %s29
      %p37 = scmp.ge.s32.totalorder %s36, 2
      %s38 = scalar_select %p37, 0, %s36
      %s39 = sadd.s32 1, %s28
      %s40 = scalar_select %p37, %s39, %s28
      %p41 = scmp.ge.s32.totalorder %s40, 1
      %s42 = scalar_select %p41, 0, %s40
      %s43 = sadd.s32 1, %s27
      %s44 = scalar_select %p41, %s43, %s27
      %p45 = scmp.ge.s32.totalorder %s44, 1
      %s46 = scalar_select %p45, 0, %s44
      %s47 = ssub.s32 %s29, %s38
      %s48 = ssub.s32 %s27, %s46
      %s49 = sor.u32 %s47, %s48
      %s50 = ssub.s32 %s28, %s42
      %s51 = sor.u32 %s49, %s50
      %p52 = scmp.eq.s32.totalorder %s51, 0
      %s54 = sadd.s32 %s53, 1
      %s55 = scalar_select %p52, %s53, %s54
      %p58 = pneg %p52
      %p59 = scmp.eq.s32.totalorder %s20, 1
      %p60 = por %p58, %p59
      %p61 = scmp.ne.s32.totalorder %s53, %s56
      %p62 = scmp.eq.s32.totalorder %s20, 0
      %p63 = por %p61, %p62
      %p64 = scmp.ne.s32.totalorder %s53, %s56
      %p65 = scmp.eq.s32.totalorder %s25, 1
      %p66 = por %p64, %p65
      %p67 = scmp.ne.s32.totalorder %s56, %s57
      %p68 = scmp.eq.s32.totalorder %s25, 0
      %p69 = por %p67, %p68
      %p70 = scmp.ne.s32.totalorder %s56, %s57
      %p71 = scmp.eq.s32.totalorder %s26, 1
      %p72 = por %p70, %p71
      %p74 = scmp.ne.s32.totalorder %s57, %s73
      %p75 = scmp.eq.s32.totalorder %s26, 0
      %p76 = por %p74, %p75
      %s77 = ssub.s32 %s28, %s42
      %p78 = scmp.eq.s32.totalorder %s77, 0
      %s80 = sadd.s32 %s79, 1
      %s81 = scalar_select %p78, %s79, %s80
      %p84 = pneg %p78
      %p85 = scmp.eq.s32.totalorder %s20, 1
      %p86 = por %p84, %p85
      %p87 = scmp.ne.s32.totalorder %s79, %s82
      %p88 = scmp.eq.s32.totalorder %s20, 0
      %p89 = por %p87, %p88
      %p90 = scmp.ne.s32.totalorder %s79, %s82
      %p91 = scmp.eq.s32.totalorder %s25, 1
      %p92 = por %p90, %p91
      %p93 = scmp.ne.s32.totalorder %s82, %s83
      %p94 = scmp.eq.s32.totalorder %s25, 0
      %p95 = por %p93, %p94
      %p96 = scmp.ne.s32.totalorder %s82, %s83
      %p97 = scmp.eq.s32.totalorder %s26, 1
      %p98 = por %p96, %p97
      %p100 = scmp.ne.s32.totalorder %s83, %s99
      %p101 = scmp.eq.s32.totalorder %s26, 0
      %p102 = por %p100, %p101
      %s103 = ssub.s32 %s27, %s46
      %p104 = scmp.eq.s32.totalorder %s103, 0
      %s106 = sadd.s32 %s105, 1
      %s107 = scalar_select %p104, %s105, %s106
      %p110 = pneg %p104
      %p111 = scmp.eq.s32.totalorder %s20, 1
      %p112 = por %p110, %p111
      %p113 = scmp.ne.s32.totalorder %s105, %s108
      %p114 = scmp.eq.s32.totalorder %s20, 0
      %p115 = por %p113, %p114
      %p116 = scmp.ne.s32.totalorder %s105, %s108
      %p117 = scmp.eq.s32.totalorder %s25, 1
      %p118 = por %p116, %p117
      %p119 = scmp.ne.s32.totalorder %s108, %s109
      %p120 = scmp.eq.s32.totalorder %s25, 0
      %p121 = por %p119, %p120
      %p122 = scmp.ne.s32.totalorder %s108, %s109
      %p123 = scmp.eq.s32.totalorder %s26, 1
      %p124 = por %p122, %p123
      %p126 = scmp.ne.s32.totalorder %s109, %s125
      %p127 = scmp.eq.s32.totalorder %s26, 0
      %p128 = por %p126, %p127
      %s129 = ssub.s32 %s29, %s38
      %p130 = scmp.eq.s32.totalorder %s129, 0
      %s132 = sadd.s32 %s131, 1
      %s133 = scalar_select %p130, %s131, %s132
      %p136 = pneg %p130
      %p137 = scmp.eq.s32.totalorder %s20, 1
      %p138 = por %p136, %p137
      %p139 = scmp.ne.s32.totalorder %s131, %s134
      %p140 = scmp.eq.s32.totalorder %s20, 0
      %p141 = por %p139, %p140
      %p142 = scmp.ne.s32.totalorder %s131, %s134
      %p143 = scmp.eq.s32.totalorder %s25, 1
      %p144 = por %p142, %p143
      %p145 = scmp.ne.s32.totalorder %s134, %s135
      %p146 = scmp.eq.s32.totalorder %s25, 0
      %p147 = por %p145, %p146
      %p148 = scmp.ne.s32.totalorder %s134, %s135
      %p149 = scmp.eq.s32.totalorder %s26, 1
      %p150 = por %p148, %p149
      %p152 = scmp.ne.s32.totalorder %s135, %s151
      %p153 = scmp.eq.s32.totalorder %s26, 0
      %p154 = por %p152, %p153
      %s156 = sadd.s32 %s155, 1
      %p159 = scmp.eq.s32.totalorder %s20, 1
      %p160 = scmp.ne.s32.totalorder %s155, %s157
      %p161 = scmp.eq.s32.totalorder %s20, 0
      %p162 = por %p160, %p161
      %p163 = scmp.ne.s32.totalorder %s155, %s157
      %p164 = scmp.eq.s32.totalorder %s25, 1
      %p165 = por %p163, %p164
      %p166 = scmp.ne.s32.totalorder %s157, %s158
      %p167 = scmp.eq.s32.totalorder %s25, 0
      %p168 = por %p166, %p167
      %p169 = scmp.ne.s32.totalorder %s157, %s158
      %p170 = scmp.eq.s32.totalorder %s26, 1
      %p171 = por %p169, %p170
      %p173 = scmp.ne.s32.totalorder %s158, %s172
      %p174 = scmp.eq.s32.totalorder %s26, 0
      %p175 = por %p173, %p174
      %s177 = sadd.s32 %s176, 1
      %p180 = scmp.eq.s32.totalorder %s20, 1
      %p181 = scmp.ne.s32.totalorder %s176, %s178
      %p182 = scmp.eq.s32.totalorder %s20, 0
      %p183 = por %p181, %p182
      %p184 = scmp.ne.s32.totalorder %s176, %s178
      %p185 = scmp.eq.s32.totalorder %s25, 1
      %p186 = por %p184, %p185
      %p187 = scmp.ne.s32.totalorder %s178, %s179
      %p188 = scmp.eq.s32.totalorder %s25, 0
      %p189 = por %p187, %p188
      %p190 = scmp.ne.s32.totalorder %s178, %s179
      %p191 = scmp.eq.s32.totalorder %s26, 1
      %p192 = por %p190, %p191
      %p194 = scmp.ne.s32.totalorder %s179, %s193
      %p195 = scmp.eq.s32.totalorder %s26, 0
      %p196 = por %p194, %p195
      %s197 = ssub.s32 %s27, %s46
      %p198 = scmp.eq.s32.totalorder %s197, 0
      %s200 = sadd.s32 %s199, 1
      %s201 = scalar_select %p198, %s199, %s200
      %p204 = pneg %p198
      %p205 = scmp.eq.s32.totalorder %s20, 1
      %p206 = por %p204, %p205
      %p207 = scmp.ne.s32.totalorder %s199, %s202
      %p208 = scmp.eq.s32.totalorder %s20, 0
      %p209 = por %p207, %p208
      %p210 = scmp.ne.s32.totalorder %s199, %s202
      %p211 = scmp.eq.s32.totalorder %s25, 1
      %p212 = por %p210, %p211
      %p213 = scmp.ne.s32.totalorder %s202, %s203
      %p214 = scmp.eq.s32.totalorder %s25, 0
      %p215 = por %p213, %p214
      %p216 = scmp.ne.s32.totalorder %s202, %s203
      %p217 = scmp.eq.s32.totalorder %s26, 1
      %p218 = por %p216, %p217
      %p220 = scmp.ne.s32.totalorder %s203, %s219
      %p221 = scmp.eq.s32.totalorder %s26, 0
      %p222 = por %p220, %p221
      %p223 = scmp.le.s32.totalorder 1, %s20
      %p224 = scmp.lt.s32.totalorder %s20, 3
      %p225 = pnand %p223, %p224
      %p226 = pneg %p225
      // Predicated region
      $region9: #{tpu_custom_call.1} parent=5 // pred_check
        _
      $region10: #{tpu_custom_call.1} parent=5 // pred_check_branch
        %228 = sbr.rel (%p225) target = $region12
      $region11: #{tpu_custom_call.1} parent=5 // pred_region
        %s229 = ssub.s32 %s20, 1
        // Predicated region
        $region13: #{tpu_custom_call.1} parent=11 // pred_check
          %p230 = pneg %p95
        $region14: #{tpu_custom_call.1} parent=11 // pred_check_branch
          %232 = sbr.rel (%p230) target = $region16
        $region15: #{tpu_custom_call.1} parent=11 // pred_region
          %s233 = smul.u32 16, %s31
          %s235 = ssub.s32 1024, 1024
          %236 = vsyncadd [#allocation7], %s235
          %s237 = smul.addr %s233, 64
          %s238 = scalar_lea.hbm %s1, %s237
          %s239 = sshll.u32 [#allocation6], 4
          %s240 = int_to_ptr.vmem [resolvable:$true] %s239
          %245 = dma.hbm_to_vmem [thread:$0]  %s238, 1024, %s240, [#allocation7], 64, 64, 4
        $region16: #{tpu_custom_call.1} parent=11 // pred_fallthru
          _
        // Predicated region
        $region17: #{tpu_custom_call.1} parent=11 // pred_check
          %p246 = pneg %p121
        $region18: #{tpu_custom_call.1} parent=11 // pred_check_branch
          %248 = sbr.rel (%p246) target = $region20
        $region19: #{tpu_custom_call.1} parent=11 // pred_region
          %s249 = smul.u32 16, %s30
          %s251 = ssub.s32 1024, 1024
          %252 = vsyncadd [#allocation7], %s251
          %s253 = smul.addr %s249, 64
          %s254 = scalar_lea.hbm %s2, %s253
          %s255 = sshll.u32 [#allocation8], 4
          %s256 = int_to_ptr.vmem [resolvable:$true] %s255
          %261 = dma.hbm_to_vmem [thread:$0]  %s254, 1024, %s256, [#allocation7], 64, 64, 4
        $region20: #{tpu_custom_call.1} parent=11 // pred_fallthru
          _
        // Predicated region
        $region21: #{tpu_custom_call.1} parent=11 // pred_check
          %p262 = pneg %p168
        $region22: #{tpu_custom_call.1} parent=11 // pred_check_branch
          %264 = sbr.rel (%p262) target = $region24
        $region23: #{tpu_custom_call.1} parent=11 // pred_region
          %s266 = ssub.s32 2048, 2048
          %267 = vsyncadd [#allocation10], %s266
          %s268 = sshll.u32 [#allocation11], 4
          %s269 = int_to_ptr.vmem [resolvable:$true] %s268
          %274 = dma.hbm_to_vmem [thread:$0]  %s4, 2048, %s269, [#allocation10], 128, 128, 8
        $region24: #{tpu_custom_call.1} parent=11 // pred_fallthru
          _
        // Predicated region
        $region25: #{tpu_custom_call.1} parent=11 // pred_check
          %p275 = pneg %p189
        $region26: #{tpu_custom_call.1} parent=11 // pred_check_branch
          %277 = sbr.rel (%p275) target = $region28
        $region27: #{tpu_custom_call.1} parent=11 // pred_region
          _
        $region28: #{tpu_custom_call.1} parent=11 // pred_fallthru
          _
      $region12: #{tpu_custom_call.1} parent=5 // pred_fallthru
        _
      %p278 = scmp.lt.s32.totalorder %s20, 2
      // Predicated region
      $region29: #{tpu_custom_call.1} parent=5 // pred_check
        %p279 = pneg %p278
      $region30: #{tpu_custom_call.1} parent=5 // pred_check_branch
        %281 = sbr.rel (%p279) target = $region32
      $region31: #{tpu_custom_call.1} parent=5 // pred_region
        // Predicated region
        $region33: #{tpu_custom_call.1} parent=31 // pred_check
          %p282 = pneg %p63
        $region34: #{tpu_custom_call.1} parent=31 // pred_check_branch
          %284 = sbr.rel (%p282) target = $region36
        $region35: #{tpu_custom_call.1} parent=31 // pred_region
          %s285 = sand.u32 %s53, 1
          %s286 = scalar_lea.sflag [#allocation4], %s285
          %s287 = sand.u32 %s53, 1
          %s288 = smul.addr %s287, 64
          %s289 = scalar_lea.vmem [#allocation3], %s288
          %s290 = smul.u32 16, %s27
          %s292 = ssub.s32 1024, 1024
          %293 = vsyncadd %s286, %s292
          %s294 = sadd.s32 %s28, %s290
          %s295 = smul.addr %s29, 16
          %s296 = sadd.s32 %s294, %s295
          %s297 = smul.addr %s296, 64
          %s298 = scalar_lea.hbm %s0, %s297
          %s299 = sshll.u32 %s289, 4
          %s300 = int_to_ptr.vmem [resolvable:$true] %s299
          %305 = dma.hbm_to_vmem [thread:$0]  %s298, 1024, %s300, %s286, 64, 64, 4
        $region36: #{tpu_custom_call.1} parent=31 // pred_fallthru
          _
        // Predicated region
        $region37: #{tpu_custom_call.1} parent=31 // pred_check
          %p306 = pneg %p141
        $region38: #{tpu_custom_call.1} parent=31 // pred_check_branch
          %308 = sbr.rel (%p306) target = $region40
        $region39: #{tpu_custom_call.1} parent=31 // pred_region
          %s309 = sand.u32 %s20, 1
          %s310 = scalar_lea.sflag [#allocation10], %s309
          %s311 = sand.u32 %s131, 1
          %s312 = smul.addr %s311, 128
          %s313 = scalar_lea.vmem [#allocation9], %s312
          %s315 = ssub.s32 2048, 2048
          %316 = vsyncadd %s310, %s315
          %s317 = smul.addr %s29, 16
          %s318 = smul.addr %s317, 128
          %s319 = scalar_lea.hbm %s3, %s318
          %s320 = sshll.u32 %s313, 4
          %s321 = int_to_ptr.vmem [resolvable:$true] %s320
          %326 = dma.hbm_to_vmem [thread:$0]  %s319, 2048, %s321, %s310, 128, 128, 8
        $region40: #{tpu_custom_call.1} parent=31 // pred_fallthru
          _
      $region32: #{tpu_custom_call.1} parent=5 // pred_fallthru
        _
      %p327 = scmp.le.s32.totalorder 1, %s20
      %p328 = scmp.lt.s32.totalorder %s20, 3
      %p329 = pnand %p327, %p328
      %p330 = pneg %p329
      // Predicated region
      $region41: #{tpu_custom_call.1} parent=5 // pred_check
        _
      $region42: #{tpu_custom_call.1} parent=5 // pred_check_branch
        %332 = sbr.rel (%p329) target = $region44
      $region43: #{tpu_custom_call.1} parent=5 // pred_region
        %s333 = ssub.s32 %s20, 1
        %s334 = sand.u32 %s56, 1
        %s335 = scalar_lea.sflag [#allocation4], %s334
        %s336 = sand.u32 %s56, 1
        %s337 = smul.addr %s336, 64
        %s338 = scalar_lea.vmem [#allocation3], %s337
        // Predicated region
        $region45: #{tpu_custom_call.1} parent=43 // pred_check
          %p339 = pneg %p69
        $region46: #{tpu_custom_call.1} parent=43 // pred_check_branch
          %341 = sbr.rel (%p339) target = $region48
        $region47: #{tpu_custom_call.1} parent=43 // pred_region
          %342 = dma.done %s335, 1024
        $region48: #{tpu_custom_call.1} parent=43 // pred_fallthru
          _
        // Predicated region
        $region49: #{tpu_custom_call.1} parent=43 // pred_check
          %p343 = pneg %p95
        $region50: #{tpu_custom_call.1} parent=43 // pred_check_branch
          %345 = sbr.rel (%p343) target = $region52
        $region51: #{tpu_custom_call.1} parent=43 // pred_region
          %346 = dma.done [#allocation7], 1024
        $region52: #{tpu_custom_call.1} parent=43 // pred_fallthru
          _
        // Predicated region
        $region53: #{tpu_custom_call.1} parent=43 // pred_check
          %p347 = pneg %p121
        $region54: #{tpu_custom_call.1} parent=43 // pred_check_branch
          %349 = sbr.rel (%p347) target = $region56
        $region55: #{tpu_custom_call.1} parent=43 // pred_region
          %350 = dma.done [#allocation7], 1024
        $region56: #{tpu_custom_call.1} parent=43 // pred_fallthru
          _
        %s351 = sand.u32 %s25, 1
        %s352 = scalar_lea.sflag [#allocation10], %s351
        %s353 = sand.u32 %s134, 1
        %s354 = smul.addr %s353, 128
        %s355 = scalar_lea.vmem [#allocation9], %s354
        // Predicated region
        $region57: #{tpu_custom_call.1} parent=43 // pred_check
          %p356 = pneg %p147
        $region58: #{tpu_custom_call.1} parent=43 // pred_check_branch
          %358 = sbr.rel (%p356) target = $region60
        $region59: #{tpu_custom_call.1} parent=43 // pred_region
          %359 = dma.done %s352, 2048
        $region60: #{tpu_custom_call.1} parent=43 // pred_fallthru
          _
        // Predicated region
        $region61: #{tpu_custom_call.1} parent=43 // pred_check
          %p360 = pneg %p168
        $region62: #{tpu_custom_call.1} parent=43 // pred_check_branch
          %362 = sbr.rel (%p360) target = $region64
        $region63: #{tpu_custom_call.1} parent=43 // pred_region
          %363 = dma.done [#allocation10], 2048
        $region64: #{tpu_custom_call.1} parent=43 // pred_fallthru
          _
        %s364 = sand.u32 %s56, 1
        %s365 = scalar_lea.sflag [#allocation4], %s364
        %s366 = sand.u32 %s56, 1
        %s367 = smul.addr %s366, 64
        %s368 = scalar_lea.vmem [#allocation3], %s367
        %p369 = pneg %p69
        %p370 = pneg %p66
        %p371 = pneg %p95
        %p372 = pneg %p92
        %p373 = pneg %p121
        %p374 = pneg %p118
        %s375 = sand.u32 %s25, 1
        %s376 = scalar_lea.sflag [#allocation10], %s375
        %s377 = sand.u32 %s134, 1
        %s378 = smul.addr %s377, 128
        %s379 = scalar_lea.vmem [#allocation9], %s378
        %p380 = pneg %p147
        %p381 = pneg %p144
        %p382 = pneg %p168
        %p383 = pneg %p165
        %p384 = pneg %p189
        %p385 = pneg %p186
        %p386 = pneg %p215
        %p387 = pneg %p212
        %s388 = smul.u32 16, %s30
        %s389 = smul.u32 16, %s31
        %s390 = smul.u32 16, %s30
        %s391 = smul.u32 16, %s30
        %p393 = scmp.eq.s32.totalorder %s31, 0
        %p394 = scmp.eq.s32.totalorder %s32, 0
        %p395 = pnand %p393, %p394
        %p396 = pneg %p395
        // Predicated region
        $region65: #{tpu_custom_call.1} parent=43 // pred_check
          _
        $region66: #{tpu_custom_call.1} parent=43 // pred_check_branch
          %398 = sbr.rel (%p395) target = $region68
        $region67: #{tpu_custom_call.1} parent=43 // pred_region
          %v399 = vld [vmem:[#allocation8] sm:$0xf]
          %v400 = vld [vmem:[#allocation8 + $0x4] sm:$0xf]
          %v401 = vld [vmem:[#allocation8 + $0x8] sm:$0xf]
          %v402 = vld [vmem:[#allocation8 + $0xc] sm:$0xf]
          %v403 = vld [vmem:[#allocation8 + $0x10] sm:$0xf]
          %v404 = vld [vmem:[#allocation8 + $0x14] sm:$0xf]
          %v405 = vld [vmem:[#allocation8 + $0x18] sm:$0xf]
          %v406 = vld [vmem:[#allocation8 + $0x1c] sm:$0xf]
          %v407 = vld [vmem:[#allocation8 + $0x20] sm:$0xf]
          %v408 = vld [vmem:[#allocation8 + $0x24] sm:$0xf]
          %v409 = vld [vmem:[#allocation8 + $0x28] sm:$0xf]
          %v410 = vld [vmem:[#allocation8 + $0x2c] sm:$0xf]
          %v411 = vld [vmem:[#allocation8 + $0x30] sm:$0xf]
          %v412 = vld [vmem:[#allocation8 + $0x34] sm:$0xf]
          %v413 = vld [vmem:[#allocation8 + $0x38] sm:$0xf]
          %v414 = vld [vmem:[#allocation8 + $0x3c] sm:$0xf]
          %v415 = vunpack.c.l.bf16 %v399
          %v416 = vunpack.c.l.bf16 %v400
          %v417 = vunpack.c.l.bf16 %v401
          %v418 = vunpack.c.l.bf16 %v402
          %v419 = vunpack.c.l.bf16 %v403
          %v420 = vunpack.c.l.bf16 %v404
          %v421 = vunpack.c.l.bf16 %v405
          %v422 = vunpack.c.l.bf16 %v406
          %v423 = vunpack.c.l.bf16 %v407
          %v424 = vunpack.c.l.bf16 %v408
          %v425 = vunpack.c.l.bf16 %v409
          %v426 = vunpack.c.l.bf16 %v410
          %v427 = vunpack.c.l.bf16 %v411
          %v428 = vunpack.c.l.bf16 %v412
          %v429 = vunpack.c.l.bf16 %v413
          %v430 = vunpack.c.l.bf16 %v414
          %v431 = vld [vmem:[#allocation11] sm:$0xff]
          %v432 = vld [vmem:[#allocation11 + $0x8] sm:$0xff]
          %v433 = vld [vmem:[#allocation11 + $0x10] sm:$0xff]
          %v434 = vld [vmem:[#allocation11 + $0x18] sm:$0xff]
          %v435 = vld [vmem:[#allocation11 + $0x20] sm:$0xff]
          %v436 = vld [vmem:[#allocation11 + $0x28] sm:$0xff]
          %v437 = vld [vmem:[#allocation11 + $0x30] sm:$0xff]
          %v438 = vld [vmem:[#allocation11 + $0x38] sm:$0xff]
          %v439 = vld [vmem:[#allocation11 + $0x40] sm:$0xff]
          %v440 = vld [vmem:[#allocation11 + $0x48] sm:$0xff]
          %v441 = vld [vmem:[#allocation11 + $0x50] sm:$0xff]
          %v442 = vld [vmem:[#allocation11 + $0x58] sm:$0xff]
          %v443 = vld [vmem:[#allocation11 + $0x60] sm:$0xff]
          %v444 = vld [vmem:[#allocation11 + $0x68] sm:$0xff]
          %v445 = vld [vmem:[#allocation11 + $0x70] sm:$0xff]
          %v446 = vld [vmem:[#allocation11 + $0x78] sm:$0xff]
          %v447 = vld [vmem:[%s5] sm:$0x1]
          %v449 = vlaneseq
          %v450 = vshrl.u32 %v449, 7
          %v451 = vsub.s32 0, %v450
          %v452 = vrot.slane %v447, %v451
          %454 = vmatprep.subr.mxu0 0.0
          %455 = vmatpush1.msra.mxu0 %v431
          %456 = vmatprep.subr.mxu0 0.0
          %457 = vmatpush1.msra.mxu0 %v432
          %458 = vmatprep.subr.mxu0 0.0
          %459 = vmatpush1.msra.mxu0 %v433
          %460 = vmatprep.subr.mxu0 0.0
          %461 = vmatpush1.msra.mxu0 %v434
          %462 = vmatprep.subr.mxu0 0.0
          %463 = vmatpush1.msra.mxu0 %v435
          %464 = vmatprep.subr.mxu0 0.0
          %465 = vmatpush1.msra.mxu0 %v436
          %466 = vmatprep.subr.mxu0 0.0
          %467 = vmatpush1.msra.mxu0 %v437
          %468 = vmatprep.subr.mxu0 0.0
          %469 = vmatpush1.msra.mxu0 %v438
          %470 = vmatprep.subr.mxu0 0.0
          %471 = vmatpush1.msra.mxu0 %v439
          %472 = vmatprep.subr.mxu0 0.0
          %473 = vmatpush1.msra.mxu0 %v440
          %474 = vmatprep.subr.mxu0 0.0
          %475 = vmatpush1.msra.mxu0 %v441
          %476 = vmatprep.subr.mxu0 0.0
          %477 = vmatpush1.msra.mxu0 %v442
          %478 = vmatprep.subr.mxu0 0.0
          %479 = vmatpush1.msra.mxu0 %v443
          %480 = vmatprep.subr.mxu0 0.0
          %481 = vmatpush1.msra.mxu0 %v444
          %482 = vmatprep.subr.mxu0 0.0
          %483 = vmatpush1.msra.mxu0 %v445
          %484 = vmatprep.subr.mxu0 0.0
          %485 = vmatpush1.msra.mxu0 %v446
          %486 = vmatprep.subr.mxu0 0.0
          %487 = vmatpush1.msra.mxu0 0.0
          %488 = vmatprep.subr.mxu0 0.0
          %489 = vmatpush1.msra.mxu0 0.0
          %490 = vmatprep.subr.mxu0 0.0
          %491 = vmatpush1.msra.mxu0 0.0
          %492 = vmatprep.subr.mxu0 0.0
          %493 = vmatpush1.msra.mxu0 0.0
          %494 = vmatprep.subr.mxu0 0.0
          %495 = vmatpush1.msra.mxu0 0.0
          %496 = vmatprep.subr.mxu0 0.0
          %497 = vmatpush1.msra.mxu0 0.0
          %498 = vmatprep.subr.mxu0 0.0
          %499 = vmatpush1.msra.mxu0 0.0
          %500 = vmatprep.subr.mxu0 0.0
          %501 = vmatpush1.msra.mxu0 0.0
          %502 = vmatprep.subr.mxu0 0.0
          %503 = vmatpush1.msra.mxu0 0.0
          %504 = vmatprep.subr.mxu0 0.0
          %505 = vmatpush1.msra.mxu0 0.0
          %506 = vmatprep.subr.mxu0 0.0
          %507 = vmatpush1.msra.mxu0 0.0
          %508 = vmatprep.subr.mxu0 0.0
          %509 = vmatpush1.msra.mxu0 0.0
          %510 = vmatprep.subr.mxu0 0.0
          %511 = vmatpush1.msra.mxu0 0.0
          %512 = vmatprep.subr.mxu0 0.0
          %513 = vmatpush1.msra.mxu0 0.0
          %514 = vmatprep.subr.mxu0 0.0
          %515 = vmatpush1.msra.mxu0 0.0
          %516 = vmatprep.subr.mxu0 0.0
          %517 = vmatpush1.msra.mxu0 0.0
          %518 = vmatprep.mubr.f32.mxu0 0.0
          %519 = vmatmul.mubr.f32.gmra.mrb[0].mxu0 %v415
          %v520 = vpop.f32.mrb[0].mxu0
          %v521 = vadd.f32 %v452, %v520
          %v522 = vpop.f32.mrb[0].mxu0
          %523 = vmatprep.mubr.f32.mxu0 0.0
          %524 = vmatmul.mubr.f32.gmra.mrb[0].mxu0 %v416
          %v525 = vpop.f32.mrb[0].mxu0
          %v526 = vadd.f32 %v452, %v525
          %v527 = vpop.f32.mrb[0].mxu0
          %528 = vmatprep.mubr.f32.mxu0 0.0
          %529 = vmatmul.mubr.f32.gmra.mrb[0].mxu0 %v417
          %v530 = vpop.f32.mrb[0].mxu0
          %v531 = vadd.f32 %v452, %v530
          %v532 = vpop.f32.mrb[0].mxu0
          %533 = vmatprep.mubr.f32.mxu0 0.0
          %534 = vmatmul.mubr.f32.gmra.mrb[0].mxu0 %v418
          %v535 = vpop.f32.mrb[0].mxu0
          %v536 = vadd.f32 %v452, %v535
          %v537 = vpop.f32.mrb[0].mxu0
          %538 = vmatprep.mubr.f32.mxu0 0.0
          %539 = vmatmul.mubr.f32.gmra.mrb[0].mxu0 %v419
          %v540 = vpop.f32.mrb[0].mxu0
          %v541 = vadd.f32 %v452, %v540
          %v542 = vpop.f32.mrb[0].mxu0
          %543 = vmatprep.mubr.f32.mxu0 0.0
          %544 = vmatmul.mubr.f32.gmra.mrb[0].mxu0 %v420
          %v545 = vpop.f32.mrb[0].mxu0
          %v546 = vadd.f32 %v452, %v545
          %v547 = vpop.f32.mrb[0].mxu0
          %548 = vmatprep.mubr.f32.mxu0 0.0
          %549 = vmatmul.mubr.f32.gmra.mrb[0].mxu0 %v421
          %v550 = vpop.f32.mrb[0].mxu0
          %v551 = vadd.f32 %v452, %v550
          %v552 = vpop.f32.mrb[0].mxu0
          %553 = vmatprep.mubr.f32.mxu0 0.0
          %554 = vmatmul.mubr.f32.gmra.mrb[0].mxu0 %v422
          %v555 = vpop.f32.mrb[0].mxu0
          %v556 = vadd.f32 %v452, %v555
          %v557 = vpop.f32.mrb[0].mxu0
          %558 = vmatprep.mubr.f32.mxu0 0.0
          %559 = vmatmul.mubr.f32.gmra.mrb[0].mxu0 %v423
          %v560 = vpop.f32.mrb[0].mxu0
          %v561 = vadd.f32 %v452, %v560
          %v562 = vpop.f32.mrb[0].mxu0
          %563 = vmatprep.mubr.f32.mxu0 0.0
          %564 = vmatmul.mubr.f32.gmra.mrb[0].mxu0 %v424
          %v565 = vpop.f32.mrb[0].mxu0
          %v566 = vadd.f32 %v452, %v565
          %v567 = vpop.f32.mrb[0].mxu0
          %568 = vmatprep.mubr.f32.mxu0 0.0
          %569 = vmatmul.mubr.f32.gmra.mrb[0].mxu0 %v425
          %v570 = vpop.f32.mrb[0].mxu0
          %v571 = vadd.f32 %v452, %v570
          %v572 = vpop.f32.mrb[0].mxu0
          %573 = vmatprep.mubr.f32.mxu0 0.0
          %574 = vmatmul.mubr.f32.gmra.mrb[0].mxu0 %v426
          %v575 = vpop.f32.mrb[0].mxu0
          %v576 = vadd.f32 %v452, %v575
          %v577 = vpop.f32.mrb[0].mxu0
          %578 = vmatprep.mubr.f32.mxu0 0.0
          %579 = vmatmul.mubr.f32.gmra.mrb[0].mxu0 %v427
          %v580 = vpop.f32.mrb[0].mxu0
          %v581 = vadd.f32 %v452, %v580
          %v582 = vpop.f32.mrb[0].mxu0
          %583 = vmatprep.mubr.f32.mxu0 0.0
          %584 = vmatmul.mubr.f32.gmra.mrb[0].mxu0 %v428
          %v585 = vpop.f32.mrb[0].mxu0
          %v586 = vadd.f32 %v452, %v585
          %v587 = vpop.f32.mrb[0].mxu0
          %588 = vmatprep.mubr.f32.mxu0 0.0
          %589 = vmatmul.mubr.f32.gmra.mrb[0].mxu0 %v429
          %v590 = vpop.f32.mrb[0].mxu0
          %v591 = vadd.f32 %v452, %v590
          %v592 = vpop.f32.mrb[0].mxu0
          %593 = vmatprep.mubr.f32.mxu0 0.0
          %594 = vmatmul.mubr.f32.gmra.mrb[0].mxu0 %v430
          %v595 = vpop.f32.mrb[0].mxu0
          %v596 = vadd.f32 %v452, %v595
          %v597 = vpop.f32.mrb[0].mxu0
          %598 = vdwg.mxu0
          %599 = vst [vmem:[#allocation12] sm:$0xff] %v521
          %600 = vst [vmem:[#allocation12 + $0x8] sm:$0xff] %v526
          %601 = vst [vmem:[#allocation12 + $0x10] sm:$0xff] %v531
          %602 = vst [vmem:[#allocation12 + $0x18] sm:$0xff] %v536
          %603 = vst [vmem:[#allocation12 + $0x20] sm:$0xff] %v541
          %604 = vst [vmem:[#allocation12 + $0x28] sm:$0xff] %v546
          %605 = vst [vmem:[#allocation12 + $0x30] sm:$0xff] %v551
          %606 = vst [vmem:[#allocation12 + $0x38] sm:$0xff] %v556
          %607 = vst [vmem:[#allocation12 + $0x40] sm:$0xff] %v561
          %608 = vst [vmem:[#allocation12 + $0x48] sm:$0xff] %v566
          %609 = vst [vmem:[#allocation12 + $0x50] sm:$0xff] %v571
          %610 = vst [vmem:[#allocation12 + $0x58] sm:$0xff] %v576
          %611 = vst [vmem:[#allocation12 + $0x60] sm:$0xff] %v581
          %612 = vst [vmem:[#allocation12 + $0x68] sm:$0xff] %v586
          %613 = vst [vmem:[#allocation12 + $0x70] sm:$0xff] %v591
          %614 = vst [vmem:[#allocation12 + $0x78] sm:$0xff] %v596
        $region68: #{tpu_custom_call.1} parent=43 // pred_fallthru
          _
        %v615 = vld [vmem:[%s338] sm:$0xf]
        %v616 = vld [vmem:[%s338 + $0x4] sm:$0xf]
        %v617 = vld [vmem:[%s338 + $0x8] sm:$0xf]
        %v618 = vld [vmem:[%s338 + $0xc] sm:$0xf]
        %v619 = vld [vmem:[%s338 + $0x10] sm:$0xf]
        %v620 = vld [vmem:[%s338 + $0x14] sm:$0xf]
        %v621 = vld [vmem:[%s338 + $0x18] sm:$0xf]
        %v622 = vld [vmem:[%s338 + $0x1c] sm:$0xf]
        %v623 = vld [vmem:[%s338 + $0x20] sm:$0xf]
        %v624 = vld [vmem:[%s338 + $0x24] sm:$0xf]
        %v625 = vld [vmem:[%s338 + $0x28] sm:$0xf]
        %v626 = vld [vmem:[%s338 + $0x2c] sm:$0xf]
        %v627 = vld [vmem:[%s338 + $0x30] sm:$0xf]
        %v628 = vld [vmem:[%s338 + $0x34] sm:$0xf]
        %v629 = vld [vmem:[%s338 + $0x38] sm:$0xf]
        %v630 = vld [vmem:[%s338 + $0x3c] sm:$0xf]
        %v631 = vld [vmem:[#allocation6] sm:$0xf]
        %v632 = vld [vmem:[#allocation6 + $0x4] sm:$0xf]
        %v633 = vld [vmem:[#allocation6 + $0x8] sm:$0xf]
        %v634 = vld [vmem:[#allocation6 + $0xc] sm:$0xf]
        %v635 = vld [vmem:[#allocation6 + $0x10] sm:$0xf]
        %v636 = vld [vmem:[#allocation6 + $0x14] sm:$0xf]
        %v637 = vld [vmem:[#allocation6 + $0x18] sm:$0xf]
        %v638 = vld [vmem:[#allocation6 + $0x1c] sm:$0xf]
        %v639 = vld [vmem:[#allocation6 + $0x20] sm:$0xf]
        %v640 = vld [vmem:[#allocation6 + $0x24] sm:$0xf]
        %v641 = vld [vmem:[#allocation6 + $0x28] sm:$0xf]
        %v642 = vld [vmem:[#allocation6 + $0x2c] sm:$0xf]
        %v643 = vld [vmem:[#allocation6 + $0x30] sm:$0xf]
        %v644 = vld [vmem:[#allocation6 + $0x34] sm:$0xf]
        %v645 = vld [vmem:[#allocation6 + $0x38] sm:$0xf]
        %v646 = vld [vmem:[#allocation6 + $0x3c] sm:$0xf]
        %v663 = vunpack.c.l.b16 %v615
        %v664 = vunpack.c.l.b16 %v616
        %v665 = vunpack.c.l.b16 %v617
        %v666 = vunpack.c.l.b16 %v618
        %v667 = vunpack.c.l.b16 %v619
        %v668 = vunpack.c.l.b16 %v620
        %v669 = vunpack.c.l.b16 %v621
        %v670 = vunpack.c.l.b16 %v622
        %v671 = vunpack.c.l.b16 %v623
        %v672 = vunpack.c.l.b16 %v624
        %v673 = vunpack.c.l.b16 %v625
        %v674 = vunpack.c.l.b16 %v626
        %v675 = vunpack.c.l.b16 %v627
        %v676 = vunpack.c.l.b16 %v628
        %v677 = vunpack.c.l.b16 %v629
        %v678 = vunpack.c.l.b16 %v630
        %v679 = vpack.c.b16 %v664, %v663
        %v680 = vpack.c.b16 %v666, %v665
        %v681 = vpack.c.b16 %v668, %v667
        %v682 = vpack.c.b16 %v670, %v669
        %v683 = vpack.c.b16 %v672, %v671
        %v684 = vpack.c.b16 %v674, %v673
        %v685 = vpack.c.b16 %v676, %v675
        %v686 = vpack.c.b16 %v678, %v677
        %v711 = vunpack.c.l.b16 %v631
        %v712 = vunpack.c.l.b16 %v632
        %v713 = vunpack.c.l.b16 %v633
        %v714 = vunpack.c.l.b16 %v634
        %v715 = vunpack.c.l.b16 %v635
        %v716 = vunpack.c.l.b16 %v636
        %v717 = vunpack.c.l.b16 %v637
        %v718 = vunpack.c.l.b16 %v638
        %v719 = vunpack.c.l.b16 %v639
        %v720 = vunpack.c.l.b16 %v640
        %v721 = vunpack.c.l.b16 %v641
        %v722 = vunpack.c.l.b16 %v642
        %v723 = vunpack.c.l.b16 %v643
        %v724 = vunpack.c.l.b16 %v644
        %v725 = vunpack.c.l.b16 %v645
        %v726 = vunpack.c.l.b16 %v646
        %v727 = vpack.c.b16 %v712, %v711
        %v728 = vpack.c.b16 %v714, %v713
        %v729 = vpack.c.b16 %v716, %v715
        %v730 = vpack.c.b16 %v718, %v717
        %v731 = vpack.c.b16 %v720, %v719
        %v732 = vpack.c.b16 %v722, %v721
        %v733 = vpack.c.b16 %v724, %v723
        %v734 = vpack.c.b16 %v726, %v725
        %743 = vmatprep.subr.bf16.mxu0 0
        %744 = vmatpush1.bf16.msra.mxu0 %v727
        %745 = vmatprep.subr.bf16.mxu0 0
        %746 = vmatpush1.bf16.msra.mxu0 %v728
        %747 = vmatprep.subr.bf16.mxu0 0
        %748 = vmatpush1.bf16.msra.mxu0 %v729
        %749 = vmatprep.subr.bf16.mxu0 0
        %750 = vmatpush1.bf16.msra.mxu0 %v730
        %751 = vmatprep.subr.bf16.mxu0 0
        %752 = vmatpush1.bf16.msra.mxu0 %v731
        %753 = vmatprep.subr.bf16.mxu0 0
        %754 = vmatpush1.bf16.msra.mxu0 %v732
        %755 = vmatprep.subr.bf16.mxu0 0
        %756 = vmatpush1.bf16.msra.mxu0 %v733
        %757 = vmatprep.subr.bf16.mxu0 0
        %758 = vmatpush1.bf16.msra.mxu0 %v734
        %759 = vmatprep.subr.bf16.mxu0 0
        %760 = vmatpush1.bf16.msra.mxu0 0
        %761 = vmatprep.subr.bf16.mxu0 0
        %762 = vmatpush1.bf16.msra.mxu0 0
        %763 = vmatprep.subr.bf16.mxu0 0
        %764 = vmatpush1.bf16.msra.mxu0 0
        %765 = vmatprep.subr.bf16.mxu0 0
        %766 = vmatpush1.bf16.msra.mxu0 0
        %767 = vmatprep.subr.bf16.mxu0 0
        %768 = vmatpush1.bf16.msra.mxu0 0
        %769 = vmatprep.subr.bf16.mxu0 0
        %770 = vmatpush1.bf16.msra.mxu0 0
        %771 = vmatprep.subr.bf16.mxu0 0
        %772 = vmatpush1.bf16.msra.mxu0 0
        %773 = vmatprep.subr.bf16.mxu0 0
        %774 = vmatpush1.bf16.msra.mxu0 0
        %775 = vmatprep.mubr.bf16.mxu0 0
        %776 = vmatmul.mubr.bf16.gmra.mrb[0].mxu0 %v679
        %v777 = vpop.f32.mrb[0].mxu0
        %v778 = vadd.f32 0.0, %v777
        %v779 = vpop.f32.mrb[0].mxu0
        %v780 = vpop.f32.mrb[0].mxu0
        %v781 = vadd.f32 0.0, %v780
        %v782 = vpop.f32.mrb[0].mxu0
        %783 = vmatprep.mubr.bf16.mxu0 0
        %784 = vmatmul.mubr.bf16.gmra.mrb[0].mxu0 %v680
        %v785 = vpop.f32.mrb[0].mxu0
        %v786 = vadd.f32 0.0, %v785
        %v787 = vpop.f32.mrb[0].mxu0
        %v788 = vpop.f32.mrb[0].mxu0
        %v789 = vadd.f32 0.0, %v788
        %v790 = vpop.f32.mrb[0].mxu0
        %791 = vmatprep.mubr.bf16.mxu0 0
        %792 = vmatmul.mubr.bf16.gmra.mrb[0].mxu0 %v681
        %v793 = vpop.f32.mrb[0].mxu0
        %v794 = vadd.f32 0.0, %v793
        %v795 = vpop.f32.mrb[0].mxu0
        %v796 = vpop.f32.mrb[0].mxu0
        %v797 = vadd.f32 0.0, %v796
        %v798 = vpop.f32.mrb[0].mxu0
        %799 = vmatprep.mubr.bf16.mxu0 0
        %800 = vmatmul.mubr.bf16.gmra.mrb[0].mxu0 %v682
        %v801 = vpop.f32.mrb[0].mxu0
        %v802 = vadd.f32 0.0, %v801
        %v803 = vpop.f32.mrb[0].mxu0
        %v804 = vpop.f32.mrb[0].mxu0
        %v805 = vadd.f32 0.0, %v804
        %v806 = vpop.f32.mrb[0].mxu0
        %807 = vmatprep.mubr.bf16.mxu0 0
        %808 = vmatmul.mubr.bf16.gmra.mrb[0].mxu0 %v683
        %v809 = vpop.f32.mrb[0].mxu0
        %v810 = vadd.f32 0.0, %v809
        %v811 = vpop.f32.mrb[0].mxu0
        %v812 = vpop.f32.mrb[0].mxu0
        %v813 = vadd.f32 0.0, %v812
        %v814 = vpop.f32.mrb[0].mxu0
        %815 = vmatprep.mubr.bf16.mxu0 0
        %816 = vmatmul.mubr.bf16.gmra.mrb[0].mxu0 %v684
        %v817 = vpop.f32.mrb[0].mxu0
        %v818 = vadd.f32 0.0, %v817
        %v819 = vpop.f32.mrb[0].mxu0
        %v820 = vpop.f32.mrb[0].mxu0
        %v821 = vadd.f32 0.0, %v820
        %v822 = vpop.f32.mrb[0].mxu0
        %823 = vmatprep.mubr.bf16.mxu0 0
        %824 = vmatmul.mubr.bf16.gmra.mrb[0].mxu0 %v685
        %v825 = vpop.f32.mrb[0].mxu0
        %v826 = vadd.f32 0.0, %v825
        %v827 = vpop.f32.mrb[0].mxu0
        %v828 = vpop.f32.mrb[0].mxu0
        %v829 = vadd.f32 0.0, %v828
        %v830 = vpop.f32.mrb[0].mxu0
        %831 = vmatprep.mubr.bf16.mxu0 0
        %832 = vmatmul.mubr.bf16.gmra.mrb[0].mxu0 %v686
        %v833 = vpop.f32.mrb[0].mxu0
        %v834 = vadd.f32 0.0, %v833
        %v835 = vpop.f32.mrb[0].mxu0
        %v836 = vpop.f32.mrb[0].mxu0
        %v837 = vadd.f32 0.0, %v836
        %v838 = vpop.f32.mrb[0].mxu0
        %839 = vdwg.mxu0
        // Predicated region
        $region69: #{tpu_custom_call.1} parent=43 // pred_check
          %p840 = pneg %p393
        $region70: #{tpu_custom_call.1} parent=43 // pred_check_branch
          %842 = sbr.rel (%p840) target = $region72
        $region71: #{tpu_custom_call.1} parent=43 // pred_region
          %s843 = smul.u32 %s32, 128
          %s844 = scalar_lea.vmem [#allocation2], %s843
          %845 = vst [vmem:[%s844] sm:$0xff] %v778
          %846 = vst [vmem:[%s844 + $0x8] sm:$0xff] %v781
          %847 = vst [vmem:[%s844 + $0x10] sm:$0xff] %v786
          %848 = vst [vmem:[%s844 + $0x18] sm:$0xff] %v789
          %849 = vst [vmem:[%s844 + $0x20] sm:$0xff] %v794
          %850 = vst [vmem:[%s844 + $0x28] sm:$0xff] %v797
          %851 = vst [vmem:[%s844 + $0x30] sm:$0xff] %v802
          %852 = vst [vmem:[%s844 + $0x38] sm:$0xff] %v805
          %853 = vst [vmem:[%s844 + $0x40] sm:$0xff] %v810
          %854 = vst [vmem:[%s844 + $0x48] sm:$0xff] %v813
          %855 = vst [vmem:[%s844 + $0x50] sm:$0xff] %v818
          %856 = vst [vmem:[%s844 + $0x58] sm:$0xff] %v821
          %857 = vst [vmem:[%s844 + $0x60] sm:$0xff] %v826
          %858 = vst [vmem:[%s844 + $0x68] sm:$0xff] %v829
          %859 = vst [vmem:[%s844 + $0x70] sm:$0xff] %v834
          %860 = vst [vmem:[%s844 + $0x78] sm:$0xff] %v837
        $region72: #{tpu_custom_call.1} parent=43 // pred_fallthru
          _
        %p861 = scmp.gt.s32.totalorder %s31, 0
        // Predicated region
        $region73: #{tpu_custom_call.1} parent=43 // pred_check
          %p862 = pneg %p861
        $region74: #{tpu_custom_call.1} parent=43 // pred_check_branch
          %864 = sbr.rel (%p862) target = $region76
        $region75: #{tpu_custom_call.1} parent=43 // pred_region
          %s865 = smul.u32 %s32, 128
          %s866 = scalar_lea.vmem [#allocation2], %s865
          %v867 = vld [vmem:[%s866] sm:$0xff]
          %v868 = vld [vmem:[%s866 + $0x8] sm:$0xff]
          %v869 = vld [vmem:[%s866 + $0x10] sm:$0xff]
          %v870 = vld [vmem:[%s866 + $0x18] sm:$0xff]
          %v871 = vld [vmem:[%s866 + $0x20] sm:$0xff]
          %v872 = vld [vmem:[%s866 + $0x28] sm:$0xff]
          %v873 = vld [vmem:[%s866 + $0x30] sm:$0xff]
          %v874 = vld [vmem:[%s866 + $0x38] sm:$0xff]
          %v875 = vld [vmem:[%s866 + $0x40] sm:$0xff]
          %v876 = vld [vmem:[%s866 + $0x48] sm:$0xff]
          %v877 = vld [vmem:[%s866 + $0x50] sm:$0xff]
          %v878 = vld [vmem:[%s866 + $0x58] sm:$0xff]
          %v879 = vld [vmem:[%s866 + $0x60] sm:$0xff]
          %v880 = vld [vmem:[%s866 + $0x68] sm:$0xff]
          %v881 = vld [vmem:[%s866 + $0x70] sm:$0xff]
          %v882 = vld [vmem:[%s866 + $0x78] sm:$0xff]
          %v883 = vadd.f32 %v867, %v778
          %v884 = vadd.f32 %v868, %v781
          %v885 = vadd.f32 %v869, %v786
          %v886 = vadd.f32 %v870, %v789
          %v887 = vadd.f32 %v871, %v794
          %v888 = vadd.f32 %v872, %v797
          %v889 = vadd.f32 %v873, %v802
          %v890 = vadd.f32 %v874, %v805
          %v891 = vadd.f32 %v875, %v810
          %v892 = vadd.f32 %v876, %v813
          %v893 = vadd.f32 %v877, %v818
          %v894 = vadd.f32 %v878, %v821
          %v895 = vadd.f32 %v879, %v826
          %v896 = vadd.f32 %v880, %v829
          %v897 = vadd.f32 %v881, %v834
          %v898 = vadd.f32 %v882, %v837
          %899 = vst [vmem:[%s866] sm:$0xff] %v883
          %900 = vst [vmem:[%s866 + $0x8] sm:$0xff] %v884
          %901 = vst [vmem:[%s866 + $0x10] sm:$0xff] %v885
          %902 = vst [vmem:[%s866 + $0x18] sm:$0xff] %v886
          %903 = vst [vmem:[%s866 + $0x20] sm:$0xff] %v887
          %904 = vst [vmem:[%s866 + $0x28] sm:$0xff] %v888
          %905 = vst [vmem:[%s866 + $0x30] sm:$0xff] %v889
          %906 = vst [vmem:[%s866 + $0x38] sm:$0xff] %v890
          %907 = vst [vmem:[%s866 + $0x40] sm:$0xff] %v891
          %908 = vst [vmem:[%s866 + $0x48] sm:$0xff] %v892
          %909 = vst [vmem:[%s866 + $0x50] sm:$0xff] %v893
          %910 = vst [vmem:[%s866 + $0x58] sm:$0xff] %v894
          %911 = vst [vmem:[%s866 + $0x60] sm:$0xff] %v895
          %912 = vst [vmem:[%s866 + $0x68] sm:$0xff] %v896
          %913 = vst [vmem:[%s866 + $0x70] sm:$0xff] %v897
          %914 = vst [vmem:[%s866 + $0x78] sm:$0xff] %v898
        $region76: #{tpu_custom_call.1} parent=43 // pred_fallthru
          _
        // Predicated region
        $region77: #{tpu_custom_call.1} parent=43 // pred_check
          %p915 = pneg %p393
        $region78: #{tpu_custom_call.1} parent=43 // pred_check_branch
          %917 = sbr.rel (%p915) target = $region80
        $region79: #{tpu_custom_call.1} parent=43 // pred_region
          %v918 = vld [vmem:[#allocation12] sm:$0xff]
          %v919 = vld [vmem:[#allocation12 + $0x8] sm:$0xff]
          %v920 = vld [vmem:[#allocation12 + $0x10] sm:$0xff]
          %v921 = vld [vmem:[#allocation12 + $0x18] sm:$0xff]
          %v922 = vld [vmem:[#allocation12 + $0x20] sm:$0xff]
          %v923 = vld [vmem:[#allocation12 + $0x28] sm:$0xff]
          %v924 = vld [vmem:[#allocation12 + $0x30] sm:$0xff]
          %v925 = vld [vmem:[#allocation12 + $0x38] sm:$0xff]
          %v926 = vld [vmem:[#allocation12 + $0x40] sm:$0xff]
          %v927 = vld [vmem:[#allocation12 + $0x48] sm:$0xff]
          %v928 = vld [vmem:[#allocation12 + $0x50] sm:$0xff]
          %v929 = vld [vmem:[#allocation12 + $0x58] sm:$0xff]
          %v930 = vld [vmem:[#allocation12 + $0x60] sm:$0xff]
          %v931 = vld [vmem:[#allocation12 + $0x68] sm:$0xff]
          %v932 = vld [vmem:[#allocation12 + $0x70] sm:$0xff]
          %v933 = vld [vmem:[#allocation12 + $0x78] sm:$0xff]
          %s934 = smul.u32 %s32, 128
          %s935 = scalar_lea.vmem [#allocation2], %s934
          %v936 = vld [vmem:[%s935] sm:$0xff]
          %v937 = vld [vmem:[%s935 + $0x8] sm:$0xff]
          %v938 = vld [vmem:[%s935 + $0x10] sm:$0xff]
          %v939 = vld [vmem:[%s935 + $0x18] sm:$0xff]
          %v940 = vld [vmem:[%s935 + $0x20] sm:$0xff]
          %v941 = vld [vmem:[%s935 + $0x28] sm:$0xff]
          %v942 = vld [vmem:[%s935 + $0x30] sm:$0xff]
          %v943 = vld [vmem:[%s935 + $0x38] sm:$0xff]
          %v944 = vld [vmem:[%s935 + $0x40] sm:$0xff]
          %v945 = vld [vmem:[%s935 + $0x48] sm:$0xff]
          %v946 = vld [vmem:[%s935 + $0x50] sm:$0xff]
          %v947 = vld [vmem:[%s935 + $0x58] sm:$0xff]
          %v948 = vld [vmem:[%s935 + $0x60] sm:$0xff]
          %v949 = vld [vmem:[%s935 + $0x68] sm:$0xff]
          %v950 = vld [vmem:[%s935 + $0x70] sm:$0xff]
          %v951 = vld [vmem:[%s935 + $0x78] sm:$0xff]
          %v952 = vld [vmem:[%s355] sm:$0xff]
          %v953 = vld [vmem:[%s355 + $0x8] sm:$0xff]
          %v954 = vld [vmem:[%s355 + $0x10] sm:$0xff]
          %v955 = vld [vmem:[%s355 + $0x18] sm:$0xff]
          %v956 = vld [vmem:[%s355 + $0x20] sm:$0xff]
          %v957 = vld [vmem:[%s355 + $0x28] sm:$0xff]
          %v958 = vld [vmem:[%s355 + $0x30] sm:$0xff]
          %v959 = vld [vmem:[%s355 + $0x38] sm:$0xff]
          %v960 = vld [vmem:[%s355 + $0x40] sm:$0xff]
          %v961 = vld [vmem:[%s355 + $0x48] sm:$0xff]
          %v962 = vld [vmem:[%s355 + $0x50] sm:$0xff]
          %v963 = vld [vmem:[%s355 + $0x58] sm:$0xff]
          %v964 = vld [vmem:[%s355 + $0x60] sm:$0xff]
          %v965 = vld [vmem:[%s355 + $0x68] sm:$0xff]
          %v966 = vld [vmem:[%s355 + $0x70] sm:$0xff]
          %v967 = vld [vmem:[%s355 + $0x78] sm:$0xff]
          %968 = vmatprep.subr.mxu0 0.0
          %969 = vmatpush1.msra.mxu0 %v952
          %970 = vmatprep.subr.mxu0 0.0
          %971 = vmatpush1.msra.mxu0 %v953
          %972 = vmatprep.subr.mxu0 0.0
          %973 = vmatpush1.msra.mxu0 %v954
          %974 = vmatprep.subr.mxu0 0.0
          %975 = vmatpush1.msra.mxu0 %v955
          %976 = vmatprep.subr.mxu0 0.0
          %977 = vmatpush1.msra.mxu0 %v956
          %978 = vmatprep.subr.mxu0 0.0
          %979 = vmatpush1.msra.mxu0 %v957
          %980 = vmatprep.subr.mxu0 0.0
          %981 = vmatpush1.msra.mxu0 %v958
          %982 = vmatprep.subr.mxu0 0.0
          %983 = vmatpush1.msra.mxu0 %v959
          %984 = vmatprep.subr.mxu0 0.0
          %985 = vmatpush1.msra.mxu0 %v960
          %986 = vmatprep.subr.mxu0 0.0
          %987 = vmatpush1.msra.mxu0 %v961
          %988 = vmatprep.subr.mxu0 0.0
          %989 = vmatpush1.msra.mxu0 %v962
          %990 = vmatprep.subr.mxu0 0.0
          %991 = vmatpush1.msra.mxu0 %v963
          %992 = vmatprep.subr.mxu0 0.0
          %993 = vmatpush1.msra.mxu0 %v964
          %994 = vmatprep.subr.mxu0 0.0
          %995 = vmatpush1.msra.mxu0 %v965
          %996 = vmatprep.subr.mxu0 0.0
          %997 = vmatpush1.msra.mxu0 %v966
          %998 = vmatprep.subr.mxu0 0.0
          %999 = vmatpush1.msra.mxu0 %v967
          %1000 = vmatprep.subr.mxu0 0.0
          %1001 = vmatpush1.msra.mxu0 0.0
          %1002 = vmatprep.subr.mxu0 0.0
          %1003 = vmatpush1.msra.mxu0 0.0
          %1004 = vmatprep.subr.mxu0 0.0
          %1005 = vmatpush1.msra.mxu0 0.0
          %1006 = vmatprep.subr.mxu0 0.0
          %1007 = vmatpush1.msra.mxu0 0.0
          %1008 = vmatprep.subr.mxu0 0.0
          %1009 = vmatpush1.msra.mxu0 0.0
          %1010 = vmatprep.subr.mxu0 0.0
          %1011 = vmatpush1.msra.mxu0 0.0
          %1012 = vmatprep.subr.mxu0 0.0
          %1013 = vmatpush1.msra.mxu0 0.0
          %1014 = vmatprep.subr.mxu0 0.0
          %1015 = vmatpush1.msra.mxu0 0.0
          %1016 = vmatprep.subr.mxu0 0.0
          %1017 = vmatpush1.msra.mxu0 0.0
          %1018 = vmatprep.subr.mxu0 0.0
          %1019 = vmatpush1.msra.mxu0 0.0
          %1020 = vmatprep.subr.mxu0 0.0
          %1021 = vmatpush1.msra.mxu0 0.0
          %1022 = vmatprep.subr.mxu0 0.0
          %1023 = vmatpush1.msra.mxu0 0.0
          %1024 = vmatprep.subr.mxu0 0.0
          %1025 = vmatpush1.msra.mxu0 0.0
          %1026 = vmatprep.subr.mxu0 0.0
          %1027 = vmatpush1.msra.mxu0 0.0
          %1028 = vmatprep.subr.mxu0 0.0
          %1029 = vmatpush1.msra.mxu0 0.0
          %1030 = vmatprep.subr.mxu0 0.0
          %1031 = vmatpush1.msra.mxu0 0.0
          %1032 = vmatprep.mubr.f32.mxu0 0.0
          %1033 = vmatmul.mubr.f32.gmra.mrb[0].mxu0 %v936
          %v1034 = vpop.f32.mrb[0].mxu0
          %v1035 = vadd.f32 0.0, %v1034
          %v1036 = vpop.f32.mrb[0].mxu0
          %1037 = vmatprep.mubr.f32.mxu0 0.0
          %1038 = vmatmul.mubr.f32.gmra.mrb[0].mxu0 %v937
          %v1039 = vpop.f32.mrb[0].mxu0
          %v1040 = vadd.f32 0.0, %v1039
          %v1041 = vpop.f32.mrb[0].mxu0
          %1042 = vmatprep.mubr.f32.mxu0 0.0
          %1043 = vmatmul.mubr.f32.gmra.mrb[0].mxu0 %v938
          %v1044 = vpop.f32.mrb[0].mxu0
          %v1045 = vadd.f32 0.0, %v1044
          %v1046 = vpop.f32.mrb[0].mxu0
          %1047 = vmatprep.mubr.f32.mxu0 0.0
          %1048 = vmatmul.mubr.f32.gmra.mrb[0].mxu0 %v939
          %v1049 = vpop.f32.mrb[0].mxu0
          %v1050 = vadd.f32 0.0, %v1049
          %v1051 = vpop.f32.mrb[0].mxu0
          %1052 = vmatprep.mubr.f32.mxu0 0.0
          %1053 = vmatmul.mubr.f32.gmra.mrb[0].mxu0 %v940
          %v1054 = vpop.f32.mrb[0].mxu0
          %v1055 = vadd.f32 0.0, %v1054
          %v1056 = vpop.f32.mrb[0].mxu0
          %1057 = vmatprep.mubr.f32.mxu0 0.0
          %1058 = vmatmul.mubr.f32.gmra.mrb[0].mxu0 %v941
          %v1059 = vpop.f32.mrb[0].mxu0
          %v1060 = vadd.f32 0.0, %v1059
          %v1061 = vpop.f32.mrb[0].mxu0
          %1062 = vmatprep.mubr.f32.mxu0 0.0
          %1063 = vmatmul.mubr.f32.gmra.mrb[0].mxu0 %v942
          %v1064 = vpop.f32.mrb[0].mxu0
          %v1065 = vadd.f32 0.0, %v1064
          %v1066 = vpop.f32.mrb[0].mxu0
          %1067 = vmatprep.mubr.f32.mxu0 0.0
          %1068 = vmatmul.mubr.f32.gmra.mrb[0].mxu0 %v943
          %v1069 = vpop.f32.mrb[0].mxu0
          %v1070 = vadd.f32 0.0, %v1069
          %v1071 = vpop.f32.mrb[0].mxu0
          %1072 = vmatprep.mubr.f32.mxu0 0.0
          %1073 = vmatmul.mubr.f32.gmra.mrb[0].mxu0 %v944
          %v1074 = vpop.f32.mrb[0].mxu0
          %v1075 = vadd.f32 0.0, %v1074
          %v1076 = vpop.f32.mrb[0].mxu0
          %1077 = vmatprep.mubr.f32.mxu0 0.0
          %1078 = vmatmul.mubr.f32.gmra.mrb[0].mxu0 %v945
          %v1079 = vpop.f32.mrb[0].mxu0
          %v1080 = vadd.f32 0.0, %v1079
          %v1081 = vpop.f32.mrb[0].mxu0
          %1082 = vmatprep.mubr.f32.mxu0 0.0
          %1083 = vmatmul.mubr.f32.gmra.mrb[0].mxu0 %v946
          %v1084 = vpop.f32.mrb[0].mxu0
          %v1085 = vadd.f32 0.0, %v1084
          %v1086 = vpop.f32.mrb[0].mxu0
          %1087 = vmatprep.mubr.f32.mxu0 0.0
          %1088 = vmatmul.mubr.f32.gmra.mrb[0].mxu0 %v947
          %v1089 = vpop.f32.mrb[0].mxu0
          %v1090 = vadd.f32 0.0, %v1089
          %v1091 = vpop.f32.mrb[0].mxu0
          %1092 = vmatprep.mubr.f32.mxu0 0.0
          %1093 = vmatmul.mubr.f32.gmra.mrb[0].mxu0 %v948
          %v1094 = vpop.f32.mrb[0].mxu0
          %v1095 = vadd.f32 0.0, %v1094
          %v1096 = vpop.f32.mrb[0].mxu0
          %1097 = vmatprep.mubr.f32.mxu0 0.0
          %1098 = vmatmul.mubr.f32.gmra.mrb[0].mxu0 %v949
          %v1099 = vpop.f32.mrb[0].mxu0
          %v1100 = vadd.f32 0.0, %v1099
          %v1101 = vpop.f32.mrb[0].mxu0
          %1102 = vmatprep.mubr.f32.mxu0 0.0
          %1103 = vmatmul.mubr.f32.gmra.mrb[0].mxu0 %v950
          %v1104 = vpop.f32.mrb[0].mxu0
          %v1105 = vadd.f32 0.0, %v1104
          %v1106 = vpop.f32.mrb[0].mxu0
          %1107 = vmatprep.mubr.f32.mxu0 0.0
          %1108 = vmatmul.mubr.f32.gmra.mrb[0].mxu0 %v951
          %v1109 = vpop.f32.mrb[0].mxu0
          %v1110 = vadd.f32 0.0, %v1109
          %v1111 = vpop.f32.mrb[0].mxu0
          %1112 = vdwg.mxu0
          %v1113 = vadd.f32 %v918, %v1035
          %v1114 = vadd.f32 %v919, %v1040
          %v1115 = vadd.f32 %v920, %v1045
          %v1116 = vadd.f32 %v921, %v1050
          %v1117 = vadd.f32 %v922, %v1055
          %v1118 = vadd.f32 %v923, %v1060
          %v1119 = vadd.f32 %v924, %v1065
          %v1120 = vadd.f32 %v925, %v1070
          %v1121 = vadd.f32 %v926, %v1075
          %v1122 = vadd.f32 %v927, %v1080
          %v1123 = vadd.f32 %v928, %v1085
          %v1124 = vadd.f32 %v929, %v1090
          %v1125 = vadd.f32 %v930, %v1095
          %v1126 = vadd.f32 %v931, %v1100
          %v1127 = vadd.f32 %v932, %v1105
          %v1128 = vadd.f32 %v933, %v1110
          %1129 = vst [vmem:[#allocation12] sm:$0xff] %v1113
          %1130 = vst [vmem:[#allocation12 + $0x8] sm:$0xff] %v1114
          %1131 = vst [vmem:[#allocation12 + $0x10] sm:$0xff] %v1115
          %1132 = vst [vmem:[#allocation12 + $0x18] sm:$0xff] %v1116
          %1133 = vst [vmem:[#allocation12 + $0x20] sm:$0xff] %v1117
          %1134 = vst [vmem:[#allocation12 + $0x28] sm:$0xff] %v1118
          %1135 = vst [vmem:[#allocation12 + $0x30] sm:$0xff] %v1119
          %1136 = vst [vmem:[#allocation12 + $0x38] sm:$0xff] %v1120
          %1137 = vst [vmem:[#allocation12 + $0x40] sm:$0xff] %v1121
          %1138 = vst [vmem:[#allocation12 + $0x48] sm:$0xff] %v1122
          %1139 = vst [vmem:[#allocation12 + $0x50] sm:$0xff] %v1123
          %1140 = vst [vmem:[#allocation12 + $0x58] sm:$0xff] %v1124
          %1141 = vst [vmem:[#allocation12 + $0x60] sm:$0xff] %v1125
          %1142 = vst [vmem:[#allocation12 + $0x68] sm:$0xff] %v1126
          %1143 = vst [vmem:[#allocation12 + $0x70] sm:$0xff] %v1127
          %1144 = vst [vmem:[#allocation12 + $0x78] sm:$0xff] %v1128
        $region80: #{tpu_custom_call.1} parent=43 // pred_fallthru
          _
        // Predicated region
        $region81: #{tpu_custom_call.1} parent=43 // pred_check
          %p1145 = pneg %p212
        $region82: #{tpu_custom_call.1} parent=43 // pred_check_branch
          %1147 = sbr.rel (%p1145) target = $region84
        $region83: #{tpu_custom_call.1} parent=43 // pred_region
          %s1148 = smul.u32 16, %s30
          %s1150 = ssub.s32 2048, 2048
          %1151 = vsyncadd [#allocation5], %s1150
          %s1152 = smul.addr %s1148, 128
          %s1153 = scalar_lea.hbm %s6, %s1152
          %s1154 = sshll.u32 [#allocation12], 4
          %s1155 = int_to_ptr.vmem [resolvable:$true] %s1154
          %1160 = dma.vmem_to_hbm [thread:$0]  %s1155, 2048, %s1153, [#allocation5], 128, 128, 8
        $region84: #{tpu_custom_call.1} parent=43 // pred_fallthru
          _
        // Predicated region
        $region85: #{tpu_custom_call.1} parent=43 // pred_check
          %p1161 = pneg %p212
        $region86: #{tpu_custom_call.1} parent=43 // pred_check_branch
          %1163 = sbr.rel (%p1161) target = $region88
        $region87: #{tpu_custom_call.1} parent=43 // pred_region
          %1164 = dma.done [#allocation5], 2048
        $region88: #{tpu_custom_call.1} parent=43 // pred_fallthru
          _
      $region44: #{tpu_custom_call.1} parent=5 // pred_fallthru
        _
      %p1165 = scmp.le.s32.totalorder 2, %s20
      // Predicated region
      $region89: #{tpu_custom_call.1} parent=5 // pred_check
        %p1166 = pneg %p1165
      $region90: #{tpu_custom_call.1} parent=5 // pred_check_branch
        %1168 = sbr.rel (%p1166) target = $region92
      $region91: #{tpu_custom_call.1} parent=5 // pred_region
        %s1169 = ssub.s32 %s20, 2
      $region92: #{tpu_custom_call.1} parent=5 // pred_fallthru
        _
    $region6: #{tpu_custom_call.1} parent=1 // loop_footer
      %s24 = sadd.s32 1, %s20
    $region7: #{tpu_custom_call.1} parent=1 // loop_footer_branch
      %19 = sbr.rel target = $region3
    $region8: #{tpu_custom_call.1} parent=1 // loop_exit
      _
    %1170 = vsyncpa [#allocation4], 1
    %s1171 = scalar_lea.sflag [#allocation4], 1
    %1172 = vsyncpa %s1171, 1
    %1173 = vsyncpa [#allocation7], 1
    %1174 = vsyncpa [#allocation10], 1
    %s1175 = scalar_lea.sflag [#allocation10], 1
    %1176 = vsyncpa %s1175, 1
    %1177 = vsyncpa [#allocation5], 1
    %s1178 = scalar_lea.sflag [#allocation5], 1
    %1179 = vsyncpa %s1178, 1

</llo_original>
